<compile_context>
chip_gen: v7x
topology: tpu7x:2x2x1
jax: 0.10.0
libtpu: 0.0.40
codegen_flags: <defaults>
</compile_context>

<pallas_src>
from functools import partial

import jax
import jax.numpy as jnp
from jax.experimental import pallas as pl
from jax.experimental.pallas import tpu as pltpu

HIDDEN = 128                 # HIDDEN_1_SIZE == HIDDEN_2_SIZE == HIDDEN_3_SIZE
NEG_SLOPE = 0.01             # torch.nn.LeakyReLU default
_COMPUTE_DTYPE = jnp.bfloat16


def _round_up(n, m):
    return ((n + m - 1) // m) * m


def _leaky(v):
    return jnp.where(v > 0, v, NEG_SLOPE * v)


def _ac_kernel(x_ref,
               w1_ref, b1_ref, w2_ref, b2_ref, w3_ref, b3_ref,
               clw_ref, clb_ref,
               critic_ref, actor_ref, *, wide):
    """Fused actor/critic MLP forward for one (TB, Kpad) batch tile.

    Weight packing (done in the wrapper):
      w1: (Kpad, 256)  = [actor_l1 | critic_l1]     (lanes 0:128 / 128:256)
      w2: (256, 256)   = block_diag(actor_l2, critic_l2)
      w3: (256, 256)   = block_diag(actor_l3, critic_l3)
      clw:(128, 128)   = critic_linear weight in column 0, zeros elsewhere
    Biases are f32, concatenated/padded the same way.
    """
    H = HIDDEN

    def mm(a, w):
        return jnp.dot(a.astype(_COMPUTE_DTYPE), w,
                       preferred_element_type=jnp.float32)

    x = x_ref[...]                                   # (TB, Kpad) bf16

    # ---- Layer 1: both towers in one wide matmul --------------------------
    h1 = _leaky(mm(x, w1_ref[...]) + b1_ref[...])    # (TB, 256) f32

    if wide:
        # v6e / v7x: 256x256 MXU -> one block-diagonal matmul per layer.
        h2 = _leaky(mm(h1, w2_ref[...]) + b2_ref[...])
        h3 = _leaky(mm(h2, w3_ref[...]) + b3_ref[...])
        ha3 = h3[:, :H]
        hc3 = h3[:, H:]
    else:
        # 128x128-MXU chips (v5e and older): run the two independent
        # 128-wide chains, interleaved so MXU drain latency is overlapped.
        ha1 = h1[:, :H]
        hc1 = h1[:, H:]
        a2 = mm(ha1, w2_ref[:H, :H])
        c2 = mm(hc1, w2_ref[H:, H:])
        ha2 = _leaky(a2 + b2_ref[:, :H])
        hc2 = _leaky(c2 + b2_ref[:, H:])
        a3 = mm(ha2, w3_ref[:H, :H])
        c3 = mm(hc2, w3_ref[H:, H:])
        ha3 = _leaky(a3 + b3_ref[:, :H])
        hc3 = _leaky(c3 + b3_ref[:, H:])

    actor_ref[...] = ha3.astype(actor_ref.dtype)

    # ---- Critic head: lane-dense (TB, 128) output, value in lane 0 --------
    cval = mm(hc3, clw_ref[...]) + clb_ref[...]
    critic_ref[...] = cval.astype(critic_ref.dtype)


def init_params(key, num_inputs, h=HIDDEN):
    """Synthetic parameters (same shapes as the PyTorch module).

    Returns (packed, raw):
      packed: kernel-layout weights (bf16) / biases (f32) described above.
      raw:    per-layer (in, out) f32 weights + (1, out) biases for reference.
    PyTorch uses orthogonal init (gain sqrt(2)) with zero bias; scaled normal
    init is used here (synthetic kernel, not a checkpoint load).
    """
    def lin(k, fan_in, fan_out):
        w = jax.random.normal(k, (fan_in, fan_out), jnp.float32)
        w = w * (jnp.sqrt(2.0) / jnp.sqrt(jnp.float32(fan_in)))
        b = jnp.zeros((1, fan_out), jnp.float32)
        return w, b

    keys = jax.random.split(key, 7)
    aw1, ab1 = lin(keys[0], num_inputs, h)
    aw2, ab2 = lin(keys[1], h, h)
    aw3, ab3 = lin(keys[2], h, h)
    cw1, cb1 = lin(keys[3], num_inputs, h)
    cw2, cb2 = lin(keys[4], h, h)
    cw3, cb3 = lin(keys[5], h, h)
    clw, clb = lin(keys[6], h, 1)

    raw = dict(aw1=aw1, ab1=ab1, aw2=aw2, ab2=ab2, aw3=aw3, ab3=ab3,
               cw1=cw1, cb1=cb1, cw2=cw2, cb2=cb2, cw3=cw3, cb3=cb3,
               clw=clw, clb=clb)

    kp = _round_up(num_inputs, 128)

    # Layer 1: [actor | critic] along output lanes, K zero-padded to kp.
    w1 = (jnp.zeros((kp, 2 * h), jnp.float32)
          .at[:num_inputs, :h].set(aw1)
          .at[:num_inputs, h:].set(cw1)).astype(_COMPUTE_DTYPE)
    b1 = jnp.concatenate([ab1, cb1], axis=1)                       # (1, 256)

    # Layers 2/3: block-diagonal packing (zero off-diagonal blocks).
    def blk_diag(a, c):
        return (jnp.zeros((2 * h, 2 * h), jnp.float32)
                .at[:h, :h].set(a)
                .at[h:, h:].set(c)).astype(_COMPUTE_DTYPE)

    w2 = blk_diag(aw2, cw2)
    b2 = jnp.concatenate([ab2, cb2], axis=1)
    w3 = blk_diag(aw3, cw3)
    b3 = jnp.concatenate([ab3, cb3], axis=1)

    # Critic head padded to a lane-dense (128, 128) weight (column 0 live).
    clw_p = (jnp.zeros((h, h), jnp.float32)
             .at[:, :1].set(clw)).astype(_COMPUTE_DTYPE)
    clb_p = jnp.zeros((1, h), jnp.float32).at[:, :1].set(clb)

    packed = dict(w1=w1, b1=b1, w2=w2, b2=b2, w3=w3, b3=b3,
                  clw=clw_p, clb=clb_p, num_inputs=num_inputs)
    return packed, raw


def _use_wide_mxu():
    """True on chips with a 256x256 MXU (v6e / v7x); False on 128x128 chips."""
    try:
        kind = jax.devices()[0].device_kind.lower()
    except Exception:
        return True
    return not any(tag in kind for tag in ("v2", "v3", "v4", "v5"))


def actor_critic_forward(x, packed, *, block_b=512, wide=None):
    """Returns (critic_value [B, 1], hidden_actor [B, HIDDEN])."""
    if wide is None:
        wide = _use_wide_mxu()

    B, feat = x.shape
    kp = packed["w1"].shape[0]
    h = HIDDEN

    # Feature padding to the 128-lane width (zeros; matching weight rows are 0).
    xb = x.astype(_COMPUTE_DTYPE)
    if feat < kp:
        xb = jnp.pad(xb, ((0, 0), (0, kp - feat)))

    # Batch tiling: big tiles for large batches, single padded tile otherwise.
    tb = block_b if B >= block_b else _round_up(B, 8)
    bp = _round_up(B, tb)
    if bp != B:
        xb = jnp.pad(xb, ((0, bp - B), (0, 0)))
    grid = (bp // tb,)

    p = packed
    critic_pad, actor_pad = pl.pallas_call(
        partial(_ac_kernel, wide=wide),
        out_shape=(jax.ShapeDtypeStruct((bp, h), jnp.float32),
                   jax.ShapeDtypeStruct((bp, h), jnp.float32)),
        grid=grid,
        in_specs=[
            pl.BlockSpec((tb, kp), lambda i: (i, 0)),          # x tile
            pl.BlockSpec(p["w1"].shape, lambda i: (0, 0)),     # resident weights
            pl.BlockSpec(p["b1"].shape, lambda i: (0, 0)),
            pl.BlockSpec(p["w2"].shape, lambda i: (0, 0)),
            pl.BlockSpec(p["b2"].shape, lambda i: (0, 0)),
            pl.BlockSpec(p["w3"].shape, lambda i: (0, 0)),
            pl.BlockSpec(p["b3"].shape, lambda i: (0, 0)),
            pl.BlockSpec(p["clw"].shape, lambda i: (0, 0)),
            pl.BlockSpec(p["clb"].shape, lambda i: (0, 0)),
        ],
        out_specs=(pl.BlockSpec((tb, h), lambda i: (i, 0)),    # critic slab
                   pl.BlockSpec((tb, h), lambda i: (i, 0))),   # hidden_actor
        compiler_params=pltpu.CompilerParams(
            dimension_semantics=("parallel",),
            vmem_limit_bytes=32 * 1024 * 1024),
    )(xb, p["w1"], p["b1"], p["w2"], p["b2"], p["w3"], p["b3"],
      p["clw"], p["clb"])

    return critic_pad[:B, :1], actor_pad[:B, :]


def _reference_forward(x, raw):
    """Pure-JAX reference of MLPBase.forward with the same bf16 weight/act
    quantization policy as the kernel (f32 accumulation, f32 activations)."""
    bf = _COMPUTE_DTYPE

    def lin(v, w, b):
        return jnp.dot(v.astype(bf), w.astype(bf),
                       preferred_element_type=jnp.float32) + b

    ha = _leaky(lin(x, raw["aw1"], raw["ab1"]))
    ha = _leaky(lin(ha, raw["aw2"], raw["ab2"]))
    ha = _leaky(lin(ha, raw["aw3"], raw["ab3"]))

    hc = _leaky(lin(x, raw["cw1"], raw["cb1"]))
    hc = _leaky(lin(hc, raw["cw2"], raw["cb2"]))
    hc = _leaky(lin(hc, raw["cw3"], raw["cb3"]))
    return lin(hc, raw["clw"], raw["clb"]), ha


if __name__ == "__main__":
    key = jax.random.PRNGKey(0)
    k_x, k_p = jax.random.split(key)

    B = 8              # batch
    num_inputs = 32    # s_size for the MLP path

    x = jax.random.normal(k_x, (B, num_inputs), jnp.float32)
    packed, raw = init_params(k_p, num_inputs)

    critic_value, hidden_actor = jax.block_until_ready(
        actor_critic_forward(x, packed))

    ref_critic, ref_actor = _reference_forward(x, raw)
    assert critic_value.shape == (B, 1)
    assert hidden_actor.shape == (B, HIDDEN)
    assert jnp.allclose(critic_value, ref_critic, atol=2e-3, rtol=2e-3)
    assert jnp.allclose(hidden_actor, ref_actor, atol=2e-3, rtol=2e-3)

    # TODO(synk): CNNBase (ActorCriticCNN) strided Conv2d towers and the
    # Categorical/DiagGaussian dist heads are not kernelized; only the
    # MLPBase forward path of ActorCriticModel is implemented here.
    print("KERNEL_OK")
</pallas_src>

<mosaic_0001>
module attributes {stable_mosaic.version = 11 : i64} {
  func.func @_ac_kernel(%arg0: i32, %arg1: memref<8x128xbf16, #tpu.memory_space<vmem>>, %arg2: memref<128x256xbf16, #tpu.memory_space<vmem>>, %arg3: memref<1x256xf32, #tpu.memory_space<vmem>>, %arg4: memref<256x256xbf16, #tpu.memory_space<vmem>>, %arg5: memref<1x256xf32, #tpu.memory_space<vmem>>, %arg6: memref<256x256xbf16, #tpu.memory_space<vmem>>, %arg7: memref<1x256xf32, #tpu.memory_space<vmem>>, %arg8: memref<128x128xbf16, #tpu.memory_space<vmem>>, %arg9: memref<1x128xf32, #tpu.memory_space<vmem>>, %arg10: memref<8x128xf32, #tpu.memory_space<vmem>>, %arg11: memref<8x128xf32, #tpu.memory_space<vmem>>) attributes {dimension_semantics = [#tpu.dimension_semantics<parallel>], iteration_bounds = array<i64: 1>, scalar_prefetch = 0 : i64, scratch_operands = 0 : i64, tpu.core_type = #tpu.core_type<tc>, window_params = [{transform_indices = @transform_0, window_bounds = array<i64: 8, 128>}, {pipeline_mode = #tpu.pipeline_mode<synchronous>, transform_indices = @transform_1, window_bounds = array<i64: 128, 256>}, {pipeline_mode = #tpu.pipeline_mode<synchronous>, transform_indices = @transform_2, window_bounds = array<i64: 1, 256>}, {pipeline_mode = #tpu.pipeline_mode<synchronous>, transform_indices = @transform_3, window_bounds = array<i64: 256, 256>}, {pipeline_mode = #tpu.pipeline_mode<synchronous>, transform_indices = @transform_4, window_bounds = array<i64: 1, 256>}, {pipeline_mode = #tpu.pipeline_mode<synchronous>, transform_indices = @transform_5, window_bounds = array<i64: 256, 256>}, {pipeline_mode = #tpu.pipeline_mode<synchronous>, transform_indices = @transform_6, window_bounds = array<i64: 1, 256>}, {pipeline_mode = #tpu.pipeline_mode<synchronous>, transform_indices = @transform_7, window_bounds = array<i64: 128, 128>}, {pipeline_mode = #tpu.pipeline_mode<synchronous>, transform_indices = @transform_8, window_bounds = array<i64: 1, 128>}, {transform_indices = @transform_9, window_bounds = array<i64: 8, 128>}, {transform_indices = @transform_10, window_bounds = array<i64: 8, 128>}]} {
    %c0 = arith.constant 0 : index
    %c0_0 = arith.constant 0 : index
    %0 = vector.load %arg1[%c0, %c0_0] : memref<8x128xbf16, #tpu.memory_space<vmem>>, vector<8x128xbf16>
    %c0_1 = arith.constant 0 : index
    %c0_2 = arith.constant 0 : index
    %1 = vector.load %arg2[%c0_1, %c0_2] : memref<128x256xbf16, #tpu.memory_space<vmem>>, vector<128x256xbf16>
    %cst = arith.constant dense<0.000000e+00> : vector<8x256xf32>
    %2 = tpu.matmul %0, %1, %cst {dimension_numbers = #tpu.dot_dimension_numbers<[1], [0], [0], [1], [0, 0, 1, 1], [], []>} : vector<8x128xbf16>, vector<128x256xbf16>, vector<8x256xf32> -> vector<8x256xf32>
    %c0_3 = arith.constant 0 : index
    %c0_4 = arith.constant 0 : index
    %3 = vector.load %arg3[%c0_3, %c0_4] : memref<1x256xf32, #tpu.memory_space<vmem>>, vector<1x256xf32>
    %4 = vector.broadcast %3 : vector<1x256xf32> to vector<8x256xf32>
    %5 = arith.addf %2, %4 : vector<8x256xf32>
    %cst_5 = arith.constant 0.000000e+00 : f32
    %6 = vector.broadcast %cst_5 : f32 to vector<8x256xf32>
    %7 = arith.cmpf ogt, %5, %6 : vector<8x256xf32>
    %cst_6 = arith.constant 0.00999999977 : f32
    %8 = vector.broadcast %cst_6 : f32 to vector<8x256xf32>
    %9 = arith.mulf %8, %5 : vector<8x256xf32>
    %10 = arith.select %7, %5, %9 : vector<8x256xi1>, vector<8x256xf32>
    %c0_7 = arith.constant 0 : index
    %c0_8 = arith.constant 0 : index
    %11 = vector.load %arg4[%c0_7, %c0_8] : memref<256x256xbf16, #tpu.memory_space<vmem>>, vector<256x256xbf16>
    %12 = arith.truncf %10 : vector<8x256xf32> to vector<8x256xbf16>
    %cst_9 = arith.constant dense<0.000000e+00> : vector<8x256xf32>
    %13 = tpu.matmul %12, %11, %cst_9 {dimension_numbers = #tpu.dot_dimension_numbers<[1], [0], [0], [1], [0, 0, 1, 1], [], []>} : vector<8x256xbf16>, vector<256x256xbf16>, vector<8x256xf32> -> vector<8x256xf32>
    %c0_10 = arith.constant 0 : index
    %c0_11 = arith.constant 0 : index
    %14 = vector.load %arg5[%c0_10, %c0_11] : memref<1x256xf32, #tpu.memory_space<vmem>>, vector<1x256xf32>
    %15 = vector.broadcast %14 : vector<1x256xf32> to vector<8x256xf32>
    %16 = arith.addf %13, %15 : vector<8x256xf32>
    %cst_12 = arith.constant 0.000000e+00 : f32
    %17 = vector.broadcast %cst_12 : f32 to vector<8x256xf32>
    %18 = arith.cmpf ogt, %16, %17 : vector<8x256xf32>
    %cst_13 = arith.constant 0.00999999977 : f32
    %19 = vector.broadcast %cst_13 : f32 to vector<8x256xf32>
    %20 = arith.mulf %19, %16 : vector<8x256xf32>
    %21 = arith.select %18, %16, %20 : vector<8x256xi1>, vector<8x256xf32>
    %c0_14 = arith.constant 0 : index
    %c0_15 = arith.constant 0 : index
    %22 = vector.load %arg6[%c0_14, %c0_15] : memref<256x256xbf16, #tpu.memory_space<vmem>>, vector<256x256xbf16>
    %23 = arith.truncf %21 : vector<8x256xf32> to vector<8x256xbf16>
    %cst_16 = arith.constant dense<0.000000e+00> : vector<8x256xf32>
    %24 = tpu.matmul %23, %22, %cst_16 {dimension_numbers = #tpu.dot_dimension_numbers<[1], [0], [0], [1], [0, 0, 1, 1], [], []>} : vector<8x256xbf16>, vector<256x256xbf16>, vector<8x256xf32> -> vector<8x256xf32>
    %c0_17 = arith.constant 0 : index
    %c0_18 = arith.constant 0 : index
    %25 = vector.load %arg7[%c0_17, %c0_18] : memref<1x256xf32, #tpu.memory_space<vmem>>, vector<1x256xf32>
    %26 = vector.broadcast %25 : vector<1x256xf32> to vector<8x256xf32>
    %27 = arith.addf %24, %26 : vector<8x256xf32>
    %cst_19 = arith.constant 0.000000e+00 : f32
    %28 = vector.broadcast %cst_19 : f32 to vector<8x256xf32>
    %29 = arith.cmpf ogt, %27, %28 : vector<8x256xf32>
    %cst_20 = arith.constant 0.00999999977 : f32
    %30 = vector.broadcast %cst_20 : f32 to vector<8x256xf32>
    %31 = arith.mulf %30, %27 : vector<8x256xf32>
    %32 = arith.select %29, %27, %31 : vector<8x256xi1>, vector<8x256xf32>
    %33 = vector.extract_strided_slice %32 {offsets = [0, 0], sizes = [8, 128], strides = [1, 1]} : vector<8x256xf32> to vector<8x128xf32>
    %34 = vector.extract_strided_slice %32 {offsets = [0, 128], sizes = [8, 128], strides = [1, 1]} : vector<8x256xf32> to vector<8x128xf32>
    %c0_21 = arith.constant 0 : index
    %c0_22 = arith.constant 0 : index
    %35 = vector.load %arg11[%c0_21, %c0_22] : memref<8x128xf32, #tpu.memory_space<vmem>>, vector<8x128xf32>
    tpu.vector_store %arg11[%c0_21, %c0_22], %33 {strides = array<i32>} : memref<8x128xf32, #tpu.memory_space<vmem>>, vector<8x128xf32>,
    %c0_23 = arith.constant 0 : index
    %c0_24 = arith.constant 0 : index
    %36 = vector.load %arg8[%c0_23, %c0_24] : memref<128x128xbf16, #tpu.memory_space<vmem>>, vector<128x128xbf16>
    %37 = arith.truncf %34 : vector<8x128xf32> to vector<8x128xbf16>
    %cst_25 = arith.constant dense<0.000000e+00> : vector<8x128xf32>
    %38 = tpu.matmul %37, %36, %cst_25 {dimension_numbers = #tpu.dot_dimension_numbers<[1], [0], [0], [1], [0, 0, 1, 1], [], []>} : vector<8x128xbf16>, vector<128x128xbf16>, vector<8x128xf32> -> vector<8x128xf32>
    %c0_26 = arith.constant 0 : index
    %c0_27 = arith.constant 0 : index
    %39 = vector.load %arg9[%c0_26, %c0_27] : memref<1x128xf32, #tpu.memory_space<vmem>>, vector<1x128xf32>
    %40 = vector.broadcast %39 : vector<1x128xf32> to vector<8x128xf32>
    %41 = arith.addf %38, %40 : vector<8x128xf32>
    %c0_28 = arith.constant 0 : index
    %c0_29 = arith.constant 0 : index
    %42 = vector.load %arg10[%c0_28, %c0_29] : memref<8x128xf32, #tpu.memory_space<vmem>>, vector<8x128xf32>
    tpu.vector_store %arg10[%c0_28, %c0_29], %41 {strides = array<i32>} : memref<8x128xf32, #tpu.memory_space<vmem>>, vector<8x128xf32>,
    return
  }
  func.func @transform_0(%arg0: i32) -> (i32, i32) {
    %c0_i32 = arith.constant 0 : i32
    %c0_i32_0 = arith.constant 0 : i32
    return %arg0, %c0_i32 : i32, i32
  }
  func.func @transform_1(%arg0: i32) -> (i32, i32) {
    %c0_i32 = arith.constant 0 : i32
    %c0_i32_0 = arith.constant 0 : i32
    %c0_i32_1 = arith.constant 0 : i32
    return %c0_i32, %c0_i32_0 : i32, i32
  }
  func.func @transform_2(%arg0: i32) -> (i32, i32) {
    %c0_i32 = arith.constant 0 : i32
    %c0_i32_0 = arith.constant 0 : i32
    %c0_i32_1 = arith.constant 0 : i32
    return %c0_i32, %c0_i32_0 : i32, i32
  }
  func.func @transform_3(%arg0: i32) -> (i32, i32) {
    %c0_i32 = arith.constant 0 : i32
    %c0_i32_0 = arith.constant 0 : i32
    %c0_i32_1 = arith.constant 0 : i32
    return %c0_i32, %c0_i32_0 : i32, i32
  }
  func.func @transform_4(%arg0: i32) -> (i32, i32) {
    %c0_i32 = arith.constant 0 : i32
    %c0_i32_0 = arith.constant 0 : i32
    %c0_i32_1 = arith.constant 0 : i32
    return %c0_i32, %c0_i32_0 : i32, i32
  }
  func.func @transform_5(%arg0: i32) -> (i32, i32) {
    %c0_i32 = arith.constant 0 : i32
    %c0_i32_0 = arith.constant 0 : i32
    %c0_i32_1 = arith.constant 0 : i32
    return %c0_i32, %c0_i32_0 : i32, i32
  }
  func.func @transform_6(%arg0: i32) -> (i32, i32) {
    %c0_i32 = arith.constant 0 : i32
    %c0_i32_0 = arith.constant 0 : i32
    %c0_i32_1 = arith.constant 0 : i32
    return %c0_i32, %c0_i32_0 : i32, i32
  }
  func.func @transform_7(%arg0: i32) -> (i32, i32) {
    %c0_i32 = arith.constant 0 : i32
    %c0_i32_0 = arith.constant 0 : i32
    %c0_i32_1 = arith.constant 0 : i32
    return %c0_i32, %c0_i32_0 : i32, i32
  }
  func.func @transform_8(%arg0: i32) -> (i32, i32) {
    %c0_i32 = arith.constant 0 : i32
    %c0_i32_0 = arith.constant 0 : i32
    %c0_i32_1 = arith.constant 0 : i32
    return %c0_i32, %c0_i32_0 : i32, i32
  }
  func.func @transform_9(%arg0: i32) -> (i32, i32) {
    %c0_i32 = arith.constant 0 : i32
    %c0_i32_0 = arith.constant 0 : i32
    return %arg0, %c0_i32 : i32, i32
  }
  func.func @transform_10(%arg0: i32) -> (i32, i32) {
    %c0_i32 = arith.constant 0 : i32
    %c0_i32_0 = arith.constant 0 : i32
    return %arg0, %c0_i32 : i32, i32
  }
}

</mosaic_0001>

<llo_original>
// kernel: tpu_custom_call.1
$region0: #{tpu_custom_call.1}
  #allocation0 [shape = 'u32[]', space=smem, size = 0x4, offset = 0x4, fixed_abs, tag = 'smem constant byte address 0x4 - core index']
  #allocation1 [shape = 'u32[144,128]{1,0:T(1,128)}', space=vmem, size = 0x12000, scoped, tag = 'internal scratch']
  %s0 = inlined_call_operand.hbm [shape: bf16[8,128], index: 0, kind: input, shape index: {}]
  %s1 = inlined_call_operand.hbm [shape: bf16[128,256], index: 1, kind: input, shape index: {}]
  %s2 = inlined_call_operand.vmem [shape: f32[1,256], index: 2, kind: input, shape index: {}]
  %s3 = inlined_call_operand.hbm [shape: bf16[256,256], index: 3, kind: input, shape index: {}]
  %s4 = inlined_call_operand.vmem [shape: f32[1,256], index: 4, kind: input, shape index: {}]
  %s5 = inlined_call_operand.hbm [shape: bf16[256,256], index: 5, kind: input, shape index: {}]
  %s6 = inlined_call_operand.vmem [shape: f32[1,256], index: 6, kind: input, shape index: {}]
  %s7 = inlined_call_operand.hbm [shape: bf16[128,128], index: 7, kind: input, shape index: {}]
  %s8 = inlined_call_operand.vmem [shape: f32[1,128], index: 8, kind: input, shape index: {}]
  %s9 = inlined_call_operand.hbm [shape: f32[8,128], index: 9, kind: output, shape index: {0}]
  %s10 = inlined_call_operand.hbm [shape: f32[8,128], index: 10, kind: output, shape index: {1}]
  %11 = xla_tuple %s9, %s10
  %s12 = sld [smem:[#allocation0]]
  $region74: #{tpu_custom_call.1} parent=0
    _
  %s14 = ssub.s32 1, %s12
  %s15 = scalar_select 0, %s14, %s12
  $region1: #{tpu_custom_call.1} parent=0
    #allocation2 [shape = 'u8[2048]{0}', space=vmem, size = 0x800, scoped, tag = 'input window, operand 0, single buffered']
    #allocation3 [shape = 's32[1]{0}', space=sflag, size = 0x4, scoped, tag = 'scoped memory for tpu_custom_call.1']
    #allocation4 [shape = 's32[1]{0}', space=sflag, size = 0x4, scoped, tag = 'scoped memory for tpu_custom_call.1']
    #allocation5 [shape = 'u8[65536]{0}', space=vmem, size = 0x10000, scoped, tag = 'input window, operand 1, single buffered']
    #allocation6 [shape = 's32[1]{0}', space=sflag, size = 0x4, scoped, tag = 'scoped memory for tpu_custom_call.1']
    #allocation7 [shape = 'u8[131072]{0}', space=vmem, size = 0x20000, scoped, tag = 'input window, operand 3, single buffered']
    #allocation8 [shape = 'u8[131072]{0}', space=vmem, size = 0x20000, scoped, tag = 'input window, operand 5, single buffered']
    #allocation9 [shape = 's32[1]{0}', space=sflag, size = 0x4, scoped, tag = 'scoped memory for tpu_custom_call.1']
    #allocation10 [shape = 'u8[32768]{0}', space=vmem, size = 0x8000, scoped, tag = 'input window, operand 7, single buffered']
    #allocation11 [shape = 'u8[4096]{0}', space=vmem, size = 0x1000, scoped, tag = 'output window, operand 0, single buffered']
    #allocation12 [shape = 'u8[4096]{0}', space=vmem, size = 0x1000, scoped, tag = 'output window, operand 1, single buffered']
    #allocation13 [shape = 's32[1]{0}', space=sflag, size = 0x4, scoped, tag = 'scoped memory for tpu_custom_call.1']
    %16 = vsyncpa [#allocation3], 0
    %17 = vsyncpa [#allocation6], 0
    %18 = vsyncpa [#allocation9], 0
    %19 = vsyncpa [#allocation4], 0
    %20 = vsyncpa [#allocation13], 0
    // Predicated region
    $region2: #{tpu_custom_call.1} parent=1 // pred_check
      _
    $region3: #{tpu_custom_call.1} parent=1 // pred_check_branch
      %22 = sbr.rel (0) target = $region5
    $region4: #{tpu_custom_call.1} parent=1 // pred_region
      %s24 = ssub.s32 64, 64
      %25 = vsyncadd [#allocation3], %s24
      %s27 = sshll.u32 [#allocation2], 4
      %s28 = int_to_ptr.vmem [resolvable:$true] %s27
      %30 = dma.hbm_to_vmem [thread:$0]  %s0, 64, %s28, [#allocation3]
    $region5: #{tpu_custom_call.1} parent=1 // pred_fallthru
      _
    // Predicated region
    $region6: #{tpu_custom_call.1} parent=1 // pred_check
      _
    $region7: #{tpu_custom_call.1} parent=1 // pred_check_branch
      %32 = sbr.rel (0) target = $region9
    $region8: #{tpu_custom_call.1} parent=1 // pred_region
      %s34 = ssub.s32 2048, 2048
      %35 = vsyncadd [#allocation6], %s34
      %s36 = sshll.u32 [#allocation5], 4
      %s37 = int_to_ptr.vmem [resolvable:$true] %s36
      %42 = dma.hbm_to_vmem [thread:$0]  %s1, 2048, %s37, [#allocation6], 128, 128, 8
    $region9: #{tpu_custom_call.1} parent=1 // pred_fallthru
      _
    // Predicated region
    $region10: #{tpu_custom_call.1} parent=1 // pred_check
      _
    $region11: #{tpu_custom_call.1} parent=1 // pred_check_branch
      %44 = sbr.rel (0) target = $region13
    $region12: #{tpu_custom_call.1} parent=1 // pred_region
      _
    $region13: #{tpu_custom_call.1} parent=1 // pred_fallthru
      _
    // Predicated region
    $region14: #{tpu_custom_call.1} parent=1 // pred_check
      _
    $region15: #{tpu_custom_call.1} parent=1 // pred_check_branch
      %46 = sbr.rel (0) target = $region17
    $region16: #{tpu_custom_call.1} parent=1 // pred_region
      %s48 = ssub.s32 4096, 4096
      %49 = vsyncadd [#allocation6], %s48
      %s50 = sshll.u32 [#allocation7], 4
      %s51 = int_to_ptr.vmem [resolvable:$true] %s50
      %56 = dma.hbm_to_vmem [thread:$0]  %s3, 4096, %s51, [#allocation6], 128, 128, 8
    $region17: #{tpu_custom_call.1} parent=1 // pred_fallthru
      _
    // Predicated region
    $region18: #{tpu_custom_call.1} parent=1 // pred_check
      _
    $region19: #{tpu_custom_call.1} parent=1 // pred_check_branch
      %58 = sbr.rel (0) target = $region21
    $region20: #{tpu_custom_call.1} parent=1 // pred_region
      _
    $region21: #{tpu_custom_call.1} parent=1 // pred_fallthru
      _
    // Predicated region
    $region22: #{tpu_custom_call.1} parent=1 // pred_check
      _
    $region23: #{tpu_custom_call.1} parent=1 // pred_check_branch
      %60 = sbr.rel (0) target = $region25
    $region24: #{tpu_custom_call.1} parent=1 // pred_region
      %s62 = ssub.s32 4096, 4096
      %63 = vsyncadd [#allocation9], %s62
      %s64 = sshll.u32 [#allocation8], 4
      %s65 = int_to_ptr.vmem [resolvable:$true] %s64
      %70 = dma.hbm_to_vmem [thread:$0]  %s5, 4096, %s65, [#allocation9], 128, 128, 8
    $region25: #{tpu_custom_call.1} parent=1 // pred_fallthru
      _
    // Predicated region
    $region26: #{tpu_custom_call.1} parent=1 // pred_check
      _
    $region27: #{tpu_custom_call.1} parent=1 // pred_check_branch
      %72 = sbr.rel (0) target = $region29
    $region28: #{tpu_custom_call.1} parent=1 // pred_region
      _
    $region29: #{tpu_custom_call.1} parent=1 // pred_fallthru
      _
    // Predicated region
    $region30: #{tpu_custom_call.1} parent=1 // pred_check
      _
    $region31: #{tpu_custom_call.1} parent=1 // pred_check_branch
      %74 = sbr.rel (0) target = $region33
    $region32: #{tpu_custom_call.1} parent=1 // pred_region
      %s76 = ssub.s32 1024, 1024
      %77 = vsyncadd [#allocation9], %s76
      %s78 = sshll.u32 [#allocation10], 4
      %s79 = int_to_ptr.vmem [resolvable:$true] %s78
      %84 = dma.hbm_to_vmem [thread:$0]  %s7, 1024, %s79, [#allocation9], 64, 64, 4
    $region33: #{tpu_custom_call.1} parent=1 // pred_fallthru
      _
    // Predicated region
    $region34: #{tpu_custom_call.1} parent=1 // pred_check
      _
    $region35: #{tpu_custom_call.1} parent=1 // pred_check_branch
      %86 = sbr.rel (0) target = $region37
    $region36: #{tpu_custom_call.1} parent=1 // pred_region
      _
    $region37: #{tpu_custom_call.1} parent=1 // pred_fallthru
      _
    // Predicated region
    $region38: #{tpu_custom_call.1} parent=1 // pred_check
      _
    $region39: #{tpu_custom_call.1} parent=1 // pred_check_branch
      %88 = sbr.rel (0) target = $region41
    $region40: #{tpu_custom_call.1} parent=1 // pred_region
      %89 = dma.done [#allocation3], 64
    $region41: #{tpu_custom_call.1} parent=1 // pred_fallthru
      _
    // Predicated region
    $region42: #{tpu_custom_call.1} parent=1 // pred_check
      _
    $region43: #{tpu_custom_call.1} parent=1 // pred_check_branch
      %91 = sbr.rel (0) target = $region45
    $region44: #{tpu_custom_call.1} parent=1 // pred_region
      %92 = dma.done [#allocation6], 2048
    $region45: #{tpu_custom_call.1} parent=1 // pred_fallthru
      _
    // Predicated region
    $region46: #{tpu_custom_call.1} parent=1 // pred_check
      _
    $region47: #{tpu_custom_call.1} parent=1 // pred_check_branch
      %94 = sbr.rel (0) target = $region49
    $region48: #{tpu_custom_call.1} parent=1 // pred_region
      %95 = dma.done [#allocation6], 4096
    $region49: #{tpu_custom_call.1} parent=1 // pred_fallthru
      _
    // Predicated region
    $region50: #{tpu_custom_call.1} parent=1 // pred_check
      _
    $region51: #{tpu_custom_call.1} parent=1 // pred_check_branch
      %97 = sbr.rel (0) target = $region53
    $region52: #{tpu_custom_call.1} parent=1 // pred_region
      %98 = dma.done [#allocation9], 4096
    $region53: #{tpu_custom_call.1} parent=1 // pred_fallthru
      _
    // Predicated region
    $region54: #{tpu_custom_call.1} parent=1 // pred_check
      _
    $region55: #{tpu_custom_call.1} parent=1 // pred_check_branch
      %100 = sbr.rel (0) target = $region57
    $region56: #{tpu_custom_call.1} parent=1 // pred_region
      %101 = dma.done [#allocation9], 1024
    $region57: #{tpu_custom_call.1} parent=1 // pred_fallthru
      _
    %v103 = vld [vmem:[#allocation2] sm:$0xf]
    %v104 = vld [vmem:[#allocation5] sm:$0xff]
    %v105 = vld [vmem:[#allocation5 + $0x8] sm:$0xff]
    %v106 = vld [vmem:[#allocation5 + $0x10] sm:$0xff]
    %v107 = vld [vmem:[#allocation5 + $0x18] sm:$0xff]
    %v108 = vld [vmem:[#allocation5 + $0x20] sm:$0xff]
    %v109 = vld [vmem:[#allocation5 + $0x28] sm:$0xff]
    %v110 = vld [vmem:[#allocation5 + $0x30] sm:$0xff]
    %v111 = vld [vmem:[#allocation5 + $0x38] sm:$0xff]
    %v112 = vld [vmem:[#allocation5 + $0x40] sm:$0xff]
    %v113 = vld [vmem:[#allocation5 + $0x48] sm:$0xff]
    %v114 = vld [vmem:[#allocation5 + $0x50] sm:$0xff]
    %v115 = vld [vmem:[#allocation5 + $0x58] sm:$0xff]
    %v116 = vld [vmem:[#allocation5 + $0x60] sm:$0xff]
    %v117 = vld [vmem:[#allocation5 + $0x68] sm:$0xff]
    %v118 = vld [vmem:[#allocation5 + $0x70] sm:$0xff]
    %v119 = vld [vmem:[#allocation5 + $0x78] sm:$0xff]
    %v120 = vld [vmem:[%s2] sm:$0x3]
    %v122 = vlaneseq
    %v123 = vshrl.u32 %v122, 7
    %v124 = vsub.s32 0, %v123
    %v125 = vrot.slane %v120, %v124
    %v126 = vlaneseq
    %v127 = vshrl.u32 %v126, 7
    %v128 = vsub.s32 1, %v127
    %v129 = vrot.slane %v120, %v128
    %v148 = vunpack.c.l.b16 %v104
    %v149 = vunpack.c.h.b16 %v104
    %v150 = vunpack.c.l.b16 %v105
    %v151 = vunpack.c.h.b16 %v105
    %v152 = vunpack.c.l.b16 %v106
    %v153 = vunpack.c.h.b16 %v106
    %v154 = vunpack.c.l.b16 %v107
    %v155 = vunpack.c.h.b16 %v107
    %v156 = vunpack.c.l.b16 %v108
    %v157 = vunpack.c.h.b16 %v108
    %v158 = vunpack.c.l.b16 %v109
    %v159 = vunpack.c.h.b16 %v109
    %v160 = vunpack.c.l.b16 %v110
    %v161 = vunpack.c.h.b16 %v110
    %v162 = vunpack.c.l.b16 %v111
    %v163 = vunpack.c.h.b16 %v111
    %v164 = vunpack.c.l.b16 %v112
    %v165 = vunpack.c.h.b16 %v112
    %v166 = vunpack.c.l.b16 %v113
    %v167 = vunpack.c.h.b16 %v113
    %v168 = vunpack.c.l.b16 %v114
    %v169 = vunpack.c.h.b16 %v114
    %v170 = vunpack.c.l.b16 %v115
    %v171 = vunpack.c.h.b16 %v115
    %v172 = vunpack.c.l.b16 %v116
    %v173 = vunpack.c.h.b16 %v116
    %v174 = vunpack.c.l.b16 %v117
    %v175 = vunpack.c.h.b16 %v117
    %v176 = vunpack.c.l.b16 %v118
    %v177 = vunpack.c.h.b16 %v118
    %v178 = vunpack.c.l.b16 %v119
    %v179 = vunpack.c.h.b16 %v119
    %v180 = vpack.c.b16 %v150, %v148
    %v181 = vpack.c.b16 %v151, %v149
    %v182 = vpack.c.b16 %v154, %v152
    %v183 = vpack.c.b16 %v155, %v153
    %v184 = vpack.c.b16 %v158, %v156
    %v185 = vpack.c.b16 %v159, %v157
    %v186 = vpack.c.b16 %v162, %v160
    %v187 = vpack.c.b16 %v163, %v161
    %v188 = vpack.c.b16 %v166, %v164
    %v189 = vpack.c.b16 %v167, %v165
    %v190 = vpack.c.b16 %v170, %v168
    %v191 = vpack.c.b16 %v171, %v169
    %v192 = vpack.c.b16 %v174, %v172
    %v193 = vpack.c.b16 %v175, %v173
    %v194 = vpack.c.b16 %v178, %v176
    %v195 = vpack.c.b16 %v179, %v177
    %212 = vmatprep.subr.bf16.mxu0 %v181
    %213 = vmatpush1.bf16.msra.mxu0 %v180
    %214 = vmatprep.subr.bf16.mxu0 %v183
    %215 = vmatpush1.bf16.msra.mxu0 %v182
    %216 = vmatprep.subr.bf16.mxu0 %v185
    %217 = vmatpush1.bf16.msra.mxu0 %v184
    %218 = vmatprep.subr.bf16.mxu0 %v187
    %219 = vmatpush1.bf16.msra.mxu0 %v186
    %220 = vmatprep.subr.bf16.mxu0 %v189
    %221 = vmatpush1.bf16.msra.mxu0 %v188
    %222 = vmatprep.subr.bf16.mxu0 %v191
    %223 = vmatpush1.bf16.msra.mxu0 %v190
    %224 = vmatprep.subr.bf16.mxu0 %v193
    %225 = vmatpush1.bf16.msra.mxu0 %v192
    %226 = vmatprep.subr.bf16.mxu0 %v195
    %227 = vmatpush1.bf16.msra.mxu0 %v194
    %228 = vmatprep.subr.bf16.mxu0 0
    %229 = vmatpush1.bf16.msra.mxu0 0
    %230 = vmatprep.subr.bf16.mxu0 0
    %231 = vmatpush1.bf16.msra.mxu0 0
    %232 = vmatprep.subr.bf16.mxu0 0
    %233 = vmatpush1.bf16.msra.mxu0 0
    %234 = vmatprep.subr.bf16.mxu0 0
    %235 = vmatpush1.bf16.msra.mxu0 0
    %236 = vmatprep.subr.bf16.mxu0 0
    %237 = vmatpush1.bf16.msra.mxu0 0
    %238 = vmatprep.subr.bf16.mxu0 0
    %239 = vmatpush1.bf16.msra.mxu0 0
    %240 = vmatprep.subr.bf16.mxu0 0
    %241 = vmatpush1.bf16.msra.mxu0 0
    %242 = vmatprep.subr.bf16.mxu0 0
    %243 = vmatpush1.bf16.msra.mxu0 0
    %244 = vmatprep.mubr.bf16.mxu0 0
    %245 = vmatmul.mubr.bf16.gmra.mrb[0].mxu0 %v103
    %v246 = vpop.f32.mrb[0].mxu0
    %v247 = vadd.f32 %v125, %v246
    %v248 = vpop.f32.mrb[0].mxu0
    %v249 = vadd.f32 %v129, %v248
    %v250 = vpop.f32.mrb[0].mxu0
    %v251 = vpop.f32.mrb[0].mxu0
    %252 = vdwg.mxu0
    %vm253 = vcmp.gt.f32.partialorder %v247, 0.0
    %vm254 = vcmp.gt.f32.partialorder %v249, 0.0
    %v255 = vmul.f32 %v247, 0.01
    %v256 = vmul.f32 %v249, 0.01
    %v257 = vsel %vm253, %v247, %v255
    %v258 = vsel %vm254, %v249, %v256
    %v259 = vld [vmem:[#allocation7] sm:$0xff]
    %v260 = vld [vmem:[#allocation7 + $0x8] sm:$0xff]
    %v261 = vld [vmem:[#allocation7 + $0x10] sm:$0xff]
    %v262 = vld [vmem:[#allocation7 + $0x18] sm:$0xff]
    %v263 = vld [vmem:[#allocation7 + $0x20] sm:$0xff]
    %v264 = vld [vmem:[#allocation7 + $0x28] sm:$0xff]
    %v265 = vld [vmem:[#allocation7 + $0x30] sm:$0xff]
    %v266 = vld [vmem:[#allocation7 + $0x38] sm:$0xff]
    %v267 = vld [vmem:[#allocation7 + $0x40] sm:$0xff]
    %v268 = vld [vmem:[#allocation7 + $0x48] sm:$0xff]
    %v269 = vld [vmem:[#allocation7 + $0x50] sm:$0xff]
    %v270 = vld [vmem:[#allocation7 + $0x58] sm:$0xff]
    %v271 = vld [vmem:[#allocation7 + $0x60] sm:$0xff]
    %v272 = vld [vmem:[#allocation7 + $0x68] sm:$0xff]
    %v273 = vld [vmem:[#allocation7 + $0x70] sm:$0xff]
    %v274 = vld [vmem:[#allocation7 + $0x78] sm:$0xff]
    %v275 = vld [vmem:[#allocation7 + $0x80] sm:$0xff]
    %v276 = vld [vmem:[#allocation7 + $0x88] sm:$0xff]
    %v277 = vld [vmem:[#allocation7 + $0x90] sm:$0xff]
    %v278 = vld [vmem:[#allocation7 + $0x98] sm:$0xff]
    %v279 = vld [vmem:[#allocation7 + $0xa0] sm:$0xff]
    %v280 = vld [vmem:[#allocation7 + $0xa8] sm:$0xff]
    %v281 = vld [vmem:[#allocation7 + $0xb0] sm:$0xff]
    %v282 = vld [vmem:[#allocation7 + $0xb8] sm:$0xff]
    %v283 = vld [vmem:[#allocation7 + $0xc0] sm:$0xff]
    %v284 = vld [vmem:[#allocation7 + $0xc8] sm:$0xff]
    %v285 = vld [vmem:[#allocation7 + $0xd0] sm:$0xff]
    %v286 = vld [vmem:[#allocation7 + $0xd8] sm:$0xff]
    %v287 = vld [vmem:[#allocation7 + $0xe0] sm:$0xff]
    %v288 = vld [vmem:[#allocation7 + $0xe8] sm:$0xff]
    %v289 = vld [vmem:[#allocation7 + $0xf0] sm:$0xff]
    %v290 = vld [vmem:[#allocation7 + $0xf8] sm:$0xff]
    %v291 = vpack.c.bf16 %v257, %v257
    %v292 = vpack.c.bf16 %v258, %v258
    %v293 = vld [vmem:[%s4] sm:$0x3]
    %v295 = vlaneseq
    %v296 = vshrl.u32 %v295, 7
    %v297 = vsub.s32 0, %v296
    %v298 = vrot.slane %v293, %v297
    %v299 = vlaneseq
    %v300 = vshrl.u32 %v299, 7
    %v301 = vsub.s32 1, %v300
    %v302 = vrot.slane %v293, %v301
    %v337 = vunpack.c.l.b16 %v259
    %v338 = vunpack.c.h.b16 %v259
    %v339 = vunpack.c.l.b16 %v260
    %v340 = vunpack.c.h.b16 %v260
    %v341 = vunpack.c.l.b16 %v261
    %v342 = vunpack.c.h.b16 %v261
    %v343 = vunpack.c.l.b16 %v262
    %v344 = vunpack.c.h.b16 %v262
    %v345 = vunpack.c.l.b16 %v263
    %v346 = vunpack.c.h.b16 %v263
    %v347 = vunpack.c.l.b16 %v264
    %v348 = vunpack.c.h.b16 %v264
    %v349 = vunpack.c.l.b16 %v265
    %v350 = vunpack.c.h.b16 %v265
    %v351 = vunpack.c.l.b16 %v266
    %v352 = vunpack.c.h.b16 %v266
    %v353 = vunpack.c.l.b16 %v267
    %v354 = vunpack.c.h.b16 %v267
    %v355 = vunpack.c.l.b16 %v268
    %v356 = vunpack.c.h.b16 %v268
    %v357 = vunpack.c.l.b16 %v269
    %v358 = vunpack.c.h.b16 %v269
    %v359 = vunpack.c.l.b16 %v270
    %v360 = vunpack.c.h.b16 %v270
    %v361 = vunpack.c.l.b16 %v271
    %v362 = vunpack.c.h.b16 %v271
    %v363 = vunpack.c.l.b16 %v272
    %v364 = vunpack.c.h.b16 %v272
    %v365 = vunpack.c.l.b16 %v273
    %v366 = vunpack.c.h.b16 %v273
    %v367 = vunpack.c.l.b16 %v274
    %v368 = vunpack.c.h.b16 %v274
    %v369 = vunpack.c.l.b16 %v275
    %v370 = vunpack.c.h.b16 %v275
    %v371 = vunpack.c.l.b16 %v276
    %v372 = vunpack.c.h.b16 %v276
    %v373 = vunpack.c.l.b16 %v277
    %v374 = vunpack.c.h.b16 %v277
    %v375 = vunpack.c.l.b16 %v278
    %v376 = vunpack.c.h.b16 %v278
    %v377 = vunpack.c.l.b16 %v279
    %v378 = vunpack.c.h.b16 %v279
    %v379 = vunpack.c.l.b16 %v280
    %v380 = vunpack.c.h.b16 %v280
    %v381 = vunpack.c.l.b16 %v281
    %v382 = vunpack.c.h.b16 %v281
    %v383 = vunpack.c.l.b16 %v282
    %v384 = vunpack.c.h.b16 %v282
    %v385 = vunpack.c.l.b16 %v283
    %v386 = vunpack.c.h.b16 %v283
    %v387 = vunpack.c.l.b16 %v284
    %v388 = vunpack.c.h.b16 %v284
    %v389 = vunpack.c.l.b16 %v285
    %v390 = vunpack.c.h.b16 %v285
    %v391 = vunpack.c.l.b16 %v286
    %v392 = vunpack.c.h.b16 %v286
    %v393 = vunpack.c.l.b16 %v287
    %v394 = vunpack.c.h.b16 %v287
    %v395 = vunpack.c.l.b16 %v288
    %v396 = vunpack.c.h.b16 %v288
    %v397 = vunpack.c.l.b16 %v289
    %v398 = vunpack.c.h.b16 %v289
    %v399 = vunpack.c.l.b16 %v290
    %v400 = vunpack.c.h.b16 %v290
    %v401 = vpack.c.b16 %v339, %v337
    %v402 = vpack.c.b16 %v340, %v338
    %v403 = vpack.c.b16 %v343, %v341
    %v404 = vpack.c.b16 %v344, %v342
    %v405 = vpack.c.b16 %v347, %v345
    %v406 = vpack.c.b16 %v348, %v346
    %v407 = vpack.c.b16 %v351, %v349
    %v408 = vpack.c.b16 %v352, %v350
    %v409 = vpack.c.b16 %v355, %v353
    %v410 = vpack.c.b16 %v356, %v354
    %v411 = vpack.c.b16 %v359, %v357
    %v412 = vpack.c.b16 %v360, %v358
    %v413 = vpack.c.b16 %v363, %v361
    %v414 = vpack.c.b16 %v364, %v362
    %v415 = vpack.c.b16 %v367, %v365
    %v416 = vpack.c.b16 %v368, %v366
    %v417 = vpack.c.b16 %v371, %v369
    %v418 = vpack.c.b16 %v372, %v370
    %v419 = vpack.c.b16 %v375, %v373
    %v420 = vpack.c.b16 %v376, %v374
    %v421 = vpack.c.b16 %v379, %v377
    %v422 = vpack.c.b16 %v380, %v378
    %v423 = vpack.c.b16 %v383, %v381
    %v424 = vpack.c.b16 %v384, %v382
    %v425 = vpack.c.b16 %v387, %v385
    %v426 = vpack.c.b16 %v388, %v386
    %v427 = vpack.c.b16 %v391, %v389
    %v428 = vpack.c.b16 %v392, %v390
    %v429 = vpack.c.b16 %v395, %v393
    %v430 = vpack.c.b16 %v396, %v394
    %v431 = vpack.c.b16 %v399, %v397
    %v432 = vpack.c.b16 %v400, %v398
    %465 = vmatprep.subr.bf16.mxu0 %v402
    %466 = vmatpush1.bf16.msra.mxu0 %v401
    %467 = vmatprep.subr.bf16.mxu0 %v404
    %468 = vmatpush1.bf16.msra.mxu0 %v403
    %469 = vmatprep.subr.bf16.mxu0 %v406
    %470 = vmatpush1.bf16.msra.mxu0 %v405
    %471 = vmatprep.subr.bf16.mxu0 %v408
    %472 = vmatpush1.bf16.msra.mxu0 %v407
    %473 = vmatprep.subr.bf16.mxu0 %v410
    %474 = vmatpush1.bf16.msra.mxu0 %v409
    %475 = vmatprep.subr.bf16.mxu0 %v412
    %476 = vmatpush1.bf16.msra.mxu0 %v411
    %477 = vmatprep.subr.bf16.mxu0 %v414
    %478 = vmatpush1.bf16.msra.mxu0 %v413
    %479 = vmatprep.subr.bf16.mxu0 %v416
    %480 = vmatpush1.bf16.msra.mxu0 %v415
    %481 = vmatprep.subr.bf16.mxu0 %v418
    %482 = vmatpush1.bf16.msra.mxu0 %v417
    %483 = vmatprep.subr.bf16.mxu0 %v420
    %484 = vmatpush1.bf16.msra.mxu0 %v419
    %485 = vmatprep.subr.bf16.mxu0 %v422
    %486 = vmatpush1.bf16.msra.mxu0 %v421
    %487 = vmatprep.subr.bf16.mxu0 %v424
    %488 = vmatpush1.bf16.msra.mxu0 %v423
    %489 = vmatprep.subr.bf16.mxu0 %v426
    %490 = vmatpush1.bf16.msra.mxu0 %v425
    %491 = vmatprep.subr.bf16.mxu0 %v428
    %492 = vmatpush1.bf16.msra.mxu0 %v427
    %493 = vmatprep.subr.bf16.mxu0 %v430
    %494 = vmatpush1.bf16.msra.mxu0 %v429
    %495 = vmatprep.subr.bf16.mxu0 %v432
    %496 = vmatpush1.bf16.msra.mxu0 %v431
    %497 = vmatprep.mubr.bf16.mxu0 %v292
    %498 = vmatmul.mubr.bf16.gmra.mrb[0].mxu0 %v291
    %v499 = vpop.f32.mrb[0].mxu0
    %v500 = vadd.f32 %v298, %v499
    %v501 = vpop.f32.mrb[0].mxu0
    %v502 = vadd.f32 %v302, %v501
    %v503 = vpop.f32.mrb[0].mxu0
    %v504 = vpop.f32.mrb[0].mxu0
    %505 = vdwg.mxu0
    %vm506 = vcmp.gt.f32.partialorder %v500, 0.0
    %vm507 = vcmp.gt.f32.partialorder %v502, 0.0
    %v508 = vmul.f32 %v500, 0.01
    %v509 = vmul.f32 %v502, 0.01
    %v510 = vsel %vm506, %v500, %v508
    %v511 = vsel %vm507, %v502, %v509
    %v512 = vld [vmem:[#allocation8] sm:$0xff]
    %v513 = vld [vmem:[#allocation8 + $0x8] sm:$0xff]
    %v514 = vld [vmem:[#allocation8 + $0x10] sm:$0xff]
    %v515 = vld [vmem:[#allocation8 + $0x18] sm:$0xff]
    %v516 = vld [vmem:[#allocation8 + $0x20] sm:$0xff]
    %v517 = vld [vmem:[#allocation8 + $0x28] sm:$0xff]
    %v518 = vld [vmem:[#allocation8 + $0x30] sm:$0xff]
    %v519 = vld [vmem:[#allocation8 + $0x38] sm:$0xff]
    %v520 = vld [vmem:[#allocation8 + $0x40] sm:$0xff]
    %v521 = vld [vmem:[#allocation8 + $0x48] sm:$0xff]
    %v522 = vld [vmem:[#allocation8 + $0x50] sm:$0xff]
    %v523 = vld [vmem:[#allocation8 + $0x58] sm:$0xff]
    %v524 = vld [vmem:[#allocation8 + $0x60] sm:$0xff]
    %v525 = vld [vmem:[#allocation8 + $0x68] sm:$0xff]
    %v526 = vld [vmem:[#allocation8 + $0x70] sm:$0xff]
    %v527 = vld [vmem:[#allocation8 + $0x78] sm:$0xff]
    %v528 = vld [vmem:[#allocation8 + $0x80] sm:$0xff]
    %v529 = vld [vmem:[#allocation8 + $0x88] sm:$0xff]
    %v530 = vld [vmem:[#allocation8 + $0x90] sm:$0xff]
    %v531 = vld [vmem:[#allocation8 + $0x98] sm:$0xff]
    %v532 = vld [vmem:[#allocation8 + $0xa0] sm:$0xff]
    %v533 = vld [vmem:[#allocation8 + $0xa8] sm:$0xff]
    %v534 = vld [vmem:[#allocation8 + $0xb0] sm:$0xff]
    %v535 = vld [vmem:[#allocation8 + $0xb8] sm:$0xff]
    %v536 = vld [vmem:[#allocation8 + $0xc0] sm:$0xff]
    %v537 = vld [vmem:[#allocation8 + $0xc8] sm:$0xff]
    %v538 = vld [vmem:[#allocation8 + $0xd0] sm:$0xff]
    %v539 = vld [vmem:[#allocation8 + $0xd8] sm:$0xff]
    %v540 = vld [vmem:[#allocation8 + $0xe0] sm:$0xff]
    %v541 = vld [vmem:[#allocation8 + $0xe8] sm:$0xff]
    %v542 = vld [vmem:[#allocation8 + $0xf0] sm:$0xff]
    %v543 = vld [vmem:[#allocation8 + $0xf8] sm:$0xff]
    %v544 = vpack.c.bf16 %v510, %v510
    %v545 = vpack.c.bf16 %v511, %v511
    %v546 = vld [vmem:[%s6] sm:$0x3]
    %v548 = vlaneseq
    %v549 = vshrl.u32 %v548, 7
    %v550 = vsub.s32 0, %v549
    %v551 = vrot.slane %v546, %v550
    %v552 = vlaneseq
    %v553 = vshrl.u32 %v552, 7
    %v554 = vsub.s32 1, %v553
    %v555 = vrot.slane %v546, %v554
    %v590 = vunpack.c.l.b16 %v512
    %v591 = vunpack.c.h.b16 %v512
    %v592 = vunpack.c.l.b16 %v513
    %v593 = vunpack.c.h.b16 %v513
    %v594 = vunpack.c.l.b16 %v514
    %v595 = vunpack.c.h.b16 %v514
    %v596 = vunpack.c.l.b16 %v515
    %v597 = vunpack.c.h.b16 %v515
    %v598 = vunpack.c.l.b16 %v516
    %v599 = vunpack.c.h.b16 %v516
    %v600 = vunpack.c.l.b16 %v517
    %v601 = vunpack.c.h.b16 %v517
    %v602 = vunpack.c.l.b16 %v518
    %v603 = vunpack.c.h.b16 %v518
    %v604 = vunpack.c.l.b16 %v519
    %v605 = vunpack.c.h.b16 %v519
    %v606 = vunpack.c.l.b16 %v520
    %v607 = vunpack.c.h.b16 %v520
    %v608 = vunpack.c.l.b16 %v521
    %v609 = vunpack.c.h.b16 %v521
    %v610 = vunpack.c.l.b16 %v522
    %v611 = vunpack.c.h.b16 %v522
    %v612 = vunpack.c.l.b16 %v523
    %v613 = vunpack.c.h.b16 %v523
    %v614 = vunpack.c.l.b16 %v524
    %v615 = vunpack.c.h.b16 %v524
    %v616 = vunpack.c.l.b16 %v525
    %v617 = vunpack.c.h.b16 %v525
    %v618 = vunpack.c.l.b16 %v526
    %v619 = vunpack.c.h.b16 %v526
    %v620 = vunpack.c.l.b16 %v527
    %v621 = vunpack.c.h.b16 %v527
    %v622 = vunpack.c.l.b16 %v528
    %v623 = vunpack.c.h.b16 %v528
    %v624 = vunpack.c.l.b16 %v529
    %v625 = vunpack.c.h.b16 %v529
    %v626 = vunpack.c.l.b16 %v530
    %v627 = vunpack.c.h.b16 %v530
    %v628 = vunpack.c.l.b16 %v531
    %v629 = vunpack.c.h.b16 %v531
    %v630 = vunpack.c.l.b16 %v532
    %v631 = vunpack.c.h.b16 %v532
    %v632 = vunpack.c.l.b16 %v533
    %v633 = vunpack.c.h.b16 %v533
    %v634 = vunpack.c.l.b16 %v534
    %v635 = vunpack.c.h.b16 %v534
    %v636 = vunpack.c.l.b16 %v535
    %v637 = vunpack.c.h.b16 %v535
    %v638 = vunpack.c.l.b16 %v536
    %v639 = vunpack.c.h.b16 %v536
    %v640 = vunpack.c.l.b16 %v537
    %v641 = vunpack.c.h.b16 %v537
    %v642 = vunpack.c.l.b16 %v538
    %v643 = vunpack.c.h.b16 %v538
    %v644 = vunpack.c.l.b16 %v539
    %v645 = vunpack.c.h.b16 %v539
    %v646 = vunpack.c.l.b16 %v540
    %v647 = vunpack.c.h.b16 %v540
    %v648 = vunpack.c.l.b16 %v541
    %v649 = vunpack.c.h.b16 %v541
    %v650 = vunpack.c.l.b16 %v542
    %v651 = vunpack.c.h.b16 %v542
    %v652 = vunpack.c.l.b16 %v543
    %v653 = vunpack.c.h.b16 %v543
    %v654 = vpack.c.b16 %v592, %v590
    %v655 = vpack.c.b16 %v593, %v591
    %v656 = vpack.c.b16 %v596, %v594
    %v657 = vpack.c.b16 %v597, %v595
    %v658 = vpack.c.b16 %v600, %v598
    %v659 = vpack.c.b16 %v601, %v599
    %v660 = vpack.c.b16 %v604, %v602
    %v661 = vpack.c.b16 %v605, %v603
    %v662 = vpack.c.b16 %v608, %v606
    %v663 = vpack.c.b16 %v609, %v607
    %v664 = vpack.c.b16 %v612, %v610
    %v665 = vpack.c.b16 %v613, %v611
    %v666 = vpack.c.b16 %v616, %v614
    %v667 = vpack.c.b16 %v617, %v615
    %v668 = vpack.c.b16 %v620, %v618
    %v669 = vpack.c.b16 %v621, %v619
    %v670 = vpack.c.b16 %v624, %v622
    %v671 = vpack.c.b16 %v625, %v623
    %v672 = vpack.c.b16 %v628, %v626
    %v673 = vpack.c.b16 %v629, %v627
    %v674 = vpack.c.b16 %v632, %v630
    %v675 = vpack.c.b16 %v633, %v631
    %v676 = vpack.c.b16 %v636, %v634
    %v677 = vpack.c.b16 %v637, %v635
    %v678 = vpack.c.b16 %v640, %v638
    %v679 = vpack.c.b16 %v641, %v639
    %v680 = vpack.c.b16 %v644, %v642
    %v681 = vpack.c.b16 %v645, %v643
    %v682 = vpack.c.b16 %v648, %v646
    %v683 = vpack.c.b16 %v649, %v647
    %v684 = vpack.c.b16 %v652, %v650
    %v685 = vpack.c.b16 %v653, %v651
    %718 = vmatprep.subr.bf16.mxu0 %v655
    %719 = vmatpush1.bf16.msra.mxu0 %v654
    %720 = vmatprep.subr.bf16.mxu0 %v657
    %721 = vmatpush1.bf16.msra.mxu0 %v656
    %722 = vmatprep.subr.bf16.mxu0 %v659
    %723 = vmatpush1.bf16.msra.mxu0 %v658
    %724 = vmatprep.subr.bf16.mxu0 %v661
    %725 = vmatpush1.bf16.msra.mxu0 %v660
    %726 = vmatprep.subr.bf16.mxu0 %v663
    %727 = vmatpush1.bf16.msra.mxu0 %v662
    %728 = vmatprep.subr.bf16.mxu0 %v665
    %729 = vmatpush1.bf16.msra.mxu0 %v664
    %730 = vmatprep.subr.bf16.mxu0 %v667
    %731 = vmatpush1.bf16.msra.mxu0 %v666
    %732 = vmatprep.subr.bf16.mxu0 %v669
    %733 = vmatpush1.bf16.msra.mxu0 %v668
    %734 = vmatprep.subr.bf16.mxu0 %v671
    %735 = vmatpush1.bf16.msra.mxu0 %v670
    %736 = vmatprep.subr.bf16.mxu0 %v673
    %737 = vmatpush1.bf16.msra.mxu0 %v672
    %738 = vmatprep.subr.bf16.mxu0 %v675
    %739 = vmatpush1.bf16.msra.mxu0 %v674
    %740 = vmatprep.subr.bf16.mxu0 %v677
    %741 = vmatpush1.bf16.msra.mxu0 %v676
    %742 = vmatprep.subr.bf16.mxu0 %v679
    %743 = vmatpush1.bf16.msra.mxu0 %v678
    %744 = vmatprep.subr.bf16.mxu0 %v681
    %745 = vmatpush1.bf16.msra.mxu0 %v680
    %746 = vmatprep.subr.bf16.mxu0 %v683
    %747 = vmatpush1.bf16.msra.mxu0 %v682
    %748 = vmatprep.subr.bf16.mxu0 %v685
    %749 = vmatpush1.bf16.msra.mxu0 %v684
    %750 = vmatprep.mubr.bf16.mxu0 %v545
    %751 = vmatmul.mubr.bf16.gmra.mrb[0].mxu0 %v544
    %v752 = vpop.f32.mrb[0].mxu0
    %v753 = vadd.f32 %v551, %v752
    %v754 = vpop.f32.mrb[0].mxu0
    %v755 = vadd.f32 %v555, %v754
    %v756 = vpop.f32.mrb[0].mxu0
    %v757 = vpop.f32.mrb[0].mxu0
    %758 = vdwg.mxu0
    %vm759 = vcmp.gt.f32.partialorder %v753, 0.0
    %vm760 = vcmp.gt.f32.partialorder %v755, 0.0
    %v761 = vmul.f32 %v753, 0.01
    %v762 = vmul.f32 %v755, 0.01
    %v763 = vsel %vm759, %v753, %v761
    %v764 = vsel %vm760, %v755, %v762
    %765 = vst [vmem:[#allocation12] sm:$0xff] %v763
    %v766 = vld [vmem:[#allocation10] sm:$0xf]
    %v767 = vld [vmem:[#allocation10 + $0x4] sm:$0xf]
    %v768 = vld [vmem:[#allocation10 + $0x8] sm:$0xf]
    %v769 = vld [vmem:[#allocation10 + $0xc] sm:$0xf]
    %v770 = vld [vmem:[#allocation10 + $0x10] sm:$0xf]
    %v771 = vld [vmem:[#allocation10 + $0x14] sm:$0xf]
    %v772 = vld [vmem:[#allocation10 + $0x18] sm:$0xf]
    %v773 = vld [vmem:[#allocation10 + $0x1c] sm:$0xf]
    %v774 = vld [vmem:[#allocation10 + $0x20] sm:$0xf]
    %v775 = vld [vmem:[#allocation10 + $0x24] sm:$0xf]
    %v776 = vld [vmem:[#allocation10 + $0x28] sm:$0xf]
    %v777 = vld [vmem:[#allocation10 + $0x2c] sm:$0xf]
    %v778 = vld [vmem:[#allocation10 + $0x30] sm:$0xf]
    %v779 = vld [vmem:[#allocation10 + $0x34] sm:$0xf]
    %v780 = vld [vmem:[#allocation10 + $0x38] sm:$0xf]
    %v781 = vld [vmem:[#allocation10 + $0x3c] sm:$0xf]
    %v782 = vpack.c.bf16 %v764, %v764
    %v783 = vld [vmem:[%s8] sm:$0x1]
    %v785 = vlaneseq
    %v786 = vshrl.u32 %v785, 7
    %v787 = vsub.s32 0, %v786
    %v788 = vrot.slane %v783, %v787
    %v806 = vunpack.c.l.b16 %v766
    %v807 = vunpack.c.l.b16 %v767
    %v808 = vunpack.c.l.b16 %v768
    %v809 = vunpack.c.l.b16 %v769
    %v810 = vunpack.c.l.b16 %v770
    %v811 = vunpack.c.l.b16 %v771
    %v812 = vunpack.c.l.b16 %v772
    %v813 = vunpack.c.l.b16 %v773
    %v814 = vunpack.c.l.b16 %v774
    %v815 = vunpack.c.l.b16 %v775
    %v816 = vunpack.c.l.b16 %v776
    %v817 = vunpack.c.l.b16 %v777
    %v818 = vunpack.c.l.b16 %v778
    %v819 = vunpack.c.l.b16 %v779
    %v820 = vunpack.c.l.b16 %v780
    %v821 = vunpack.c.l.b16 %v781
    %v822 = vpack.c.b16 %v807, %v806
    %v823 = vpack.c.b16 %v809, %v808
    %v824 = vpack.c.b16 %v811, %v810
    %v825 = vpack.c.b16 %v813, %v812
    %v826 = vpack.c.b16 %v815, %v814
    %v827 = vpack.c.b16 %v817, %v816
    %v828 = vpack.c.b16 %v819, %v818
    %v829 = vpack.c.b16 %v821, %v820
    %838 = vmatprep.subr.bf16.mxu0 0
    %839 = vmatpush1.bf16.msra.mxu0 %v822
    %840 = vmatprep.subr.bf16.mxu0 0
    %841 = vmatpush1.bf16.msra.mxu0 %v823
    %842 = vmatprep.subr.bf16.mxu0 0
    %843 = vmatpush1.bf16.msra.mxu0 %v824
    %844 = vmatprep.subr.bf16.mxu0 0
    %845 = vmatpush1.bf16.msra.mxu0 %v825
    %846 = vmatprep.subr.bf16.mxu0 0
    %847 = vmatpush1.bf16.msra.mxu0 %v826
    %848 = vmatprep.subr.bf16.mxu0 0
    %849 = vmatpush1.bf16.msra.mxu0 %v827
    %850 = vmatprep.subr.bf16.mxu0 0
    %851 = vmatpush1.bf16.msra.mxu0 %v828
    %852 = vmatprep.subr.bf16.mxu0 0
    %853 = vmatpush1.bf16.msra.mxu0 %v829
    %854 = vmatprep.subr.bf16.mxu0 0
    %855 = vmatpush1.bf16.msra.mxu0 0
    %856 = vmatprep.subr.bf16.mxu0 0
    %857 = vmatpush1.bf16.msra.mxu0 0
    %858 = vmatprep.subr.bf16.mxu0 0
    %859 = vmatpush1.bf16.msra.mxu0 0
    %860 = vmatprep.subr.bf16.mxu0 0
    %861 = vmatpush1.bf16.msra.mxu0 0
    %862 = vmatprep.subr.bf16.mxu0 0
    %863 = vmatpush1.bf16.msra.mxu0 0
    %864 = vmatprep.subr.bf16.mxu0 0
    %865 = vmatpush1.bf16.msra.mxu0 0
    %866 = vmatprep.subr.bf16.mxu0 0
    %867 = vmatpush1.bf16.msra.mxu0 0
    %868 = vmatprep.subr.bf16.mxu0 0
    %869 = vmatpush1.bf16.msra.mxu0 0
    %870 = vmatprep.mubr.bf16.mxu0 0
    %871 = vmatmul.mubr.bf16.gmra.mrb[0].mxu0 %v782
    %v872 = vpop.f32.mrb[0].mxu0
    %v873 = vadd.f32 %v788, %v872
    %v874 = vpop.f32.mrb[0].mxu0
    %v875 = vpop.f32.mrb[0].mxu0
    %v876 = vpop.f32.mrb[0].mxu0
    %877 = vdwg.mxu0
    %878 = vst [vmem:[#allocation11] sm:$0xff] %v873
    // Predicated region
    $region58: #{tpu_custom_call.1} parent=1 // pred_check
      _
    $region59: #{tpu_custom_call.1} parent=1 // pred_check_branch
      %880 = sbr.rel (0) target = $region61
    $region60: #{tpu_custom_call.1} parent=1 // pred_region
      %s882 = ssub.s32 128, 128
      %883 = vsyncadd [#allocation4], %s882
      %s885 = sshll.u32 [#allocation11], 4
      %s886 = int_to_ptr.vmem [resolvable:$true] %s885
      %888 = dma.vmem_to_hbm [thread:$0]  %s886, 128, %s9, [#allocation4]
    $region61: #{tpu_custom_call.1} parent=1 // pred_fallthru
      _
    // Predicated region
    $region62: #{tpu_custom_call.1} parent=1 // pred_check
      _
    $region63: #{tpu_custom_call.1} parent=1 // pred_check_branch
      %890 = sbr.rel (0) target = $region65
    $region64: #{tpu_custom_call.1} parent=1 // pred_region
      %s892 = ssub.s32 128, 128
      %893 = vsyncadd [#allocation13], %s892
      %s895 = sshll.u32 [#allocation12], 4
      %s896 = int_to_ptr.vmem [resolvable:$true] %s895
      %898 = dma.vmem_to_hbm [thread:$0]  %s896, 128, %s10, [#allocation13]
    $region65: #{tpu_custom_call.1} parent=1 // pred_fallthru
      _
    // Predicated region
    $region66: #{tpu_custom_call.1} parent=1 // pred_check
      _
    $region67: #{tpu_custom_call.1} parent=1 // pred_check_branch
      %900 = sbr.rel (0) target = $region69
    $region68: #{tpu_custom_call.1} parent=1 // pred_region
      %901 = dma.done [#allocation4], 128
    $region69: #{tpu_custom_call.1} parent=1 // pred_fallthru
      _
    // Predicated region
    $region70: #{tpu_custom_call.1} parent=1 // pred_check
      _
    $region71: #{tpu_custom_call.1} parent=1 // pred_check_branch
      %903 = sbr.rel (0) target = $region73
    $region72: #{tpu_custom_call.1} parent=1 // pred_region
      %904 = dma.done [#allocation13], 128
    $region73: #{tpu_custom_call.1} parent=1 // pred_fallthru
      _
    %905 = vsyncpa [#allocation3], 1
    %906 = vsyncpa [#allocation6], 1
    %907 = vsyncpa [#allocation9], 1
    %908 = vsyncpa [#allocation4], 1
    %909 = vsyncpa [#allocation13], 1

</llo_original>
